<compile_context>
chip_gen: v5e
topology: v5e:2x2
jax: 0.10.0
libtpu: 0.0.40
codegen_flags: <defaults>
</compile_context>

<pallas_src>
import math

import jax
import jax.numpy as jnp
import numpy as np
from jax import lax
from jax.experimental import pallas as pl
from jax.experimental.pallas import tpu as pltpu


def cnn_dim_out(in_size, ker, stride, padding):
    return math.floor((in_size - ker + 2 * padding) / stride) + 1


def _round_up(x, m):
    return ((x + m - 1) // m) * m


def _divisor_tiles(total, cap):
    """Multiples of 128 that divide `total` (itself a 128-multiple), descending."""
    cap = max(128, (cap // 128) * 128)
    top = min(total, cap)
    tiles = [t for t in range(top, 127, -128) if total % t == 0]
    return tiles or [128]


# ------------------------------------------------------------------
# Fused Pallas kernel: r = img @ W, then out += E @ r (+ bias), one pass.
# ------------------------------------------------------------------
def _make_fused_kernel(Bc, CM):
    def kernel(img_ref, w_ref, e_ref, b_ref, o_ref, r_acc):
        # grid = (batch_chunk, p_tile, block, np_tile); reduction axes innermost.
        n = pl.program_id(2)            # block index (matmul-2 reduction)
        kt = pl.program_id(3)           # NP tile index (matmul-1 reduction)
        kt_last = pl.num_programs(3) - 1

        # Output block is VMEM-resident across the whole (n, kt) reduction:
        # initialize it with the bias once, accumulate straight into it.
        @pl.when(jnp.logical_and(n == 0, kt == 0))
        def _():
            o_ref[...] = jnp.broadcast_to(b_ref[...], o_ref.shape)

        @pl.when(kt == 0)
        def _():
            r_acc[...] = jnp.zeros_like(r_acc)

        # matmul 1 partial product (bf16 operands on the MXU, f32 accumulation):
        #   r_acc[b*CM+cm, p] += sum_np img[b*CM+cm, np] * w[np, p]
        r_acc[...] += jnp.dot(img_ref[...], w_ref[...],
                              preferred_element_type=jnp.float32)

        # matmul 2 epilogue for this block: tiny-M (ch_out*4) x CM contraction,
        # per batch row-group, on the f32 r-tile already resident in VMEM.
        @pl.when(kt == kt_last)
        def _():
            e = e_ref[...]
            for b in range(Bc):
                o_ref[b] += jnp.dot(e, r_acc[b * CM:(b + 1) * CM, :],
                                    preferred_element_type=jnp.float32)

    return kernel


# ------------------------------------------------------------------
# MLPGConv_P4 forward (fused Pallas matmuls, JAX glue for tiny einsums)
# ------------------------------------------------------------------
def mlp_gconv_p4_forward(img, params, *, max_tp=1024, max_tnp=2048,
                         compute_dtype=jnp.bfloat16,
                         vmem_budget_bytes=20 * 1024 * 1024):
    conv_w = params['conv_w']            # (ch_out, ch_in, 4, ks, ks)
    conv_b = params['conv_b']            # (ch_out,)
    mtx1 = params['mtx1']                # (ks^2, M1)
    mtx2 = params['mtx2']                # (ks^2 * M1, blocks)
    weights = params['weights']          # (blocks, P, NP)
    cpt = params['cparams_transform']    # (16, 4, ks^2, ks^2)

    B, ch_in, G, H, W = img.shape        # G == 4
    ch_out = conv_w.shape[0]
    ks = conv_w.shape[-1]
    ks2 = ks * ks
    blocks, P, NP = weights.shape
    M1 = mtx1.shape[1]
    cd = int(round(math.sqrt(P)))
    CM = ch_in * 4                       # matmul-2 reduction dim
    IK = ch_out * 4                      # matmul-2 rows (tiny)

    hi = lax.Precision.HIGHEST
    # ---- tiny parameter-combination glue (ks^2-sized tensors, plain JAX) ----
    A = jnp.einsum('qr,qrn->qn', mtx1, mtx2.reshape(ks2, M1, blocks), precision=hi)
    cpt4 = cpt.reshape(4, 4, 4, ks2, ks2)              # (k, m, b', q, j')
    cw = conv_w.reshape(ch_out, ch_in, 4, ks2)         # (i, c, b', j')
    cp = jnp.einsum('kmbqj,icbj->ickmq', cpt4, cw, precision=hi)
    E = jnp.einsum('ickmq,qn->ickmn', cp, A, precision=hi)    # (i, c, k, m, n)
    # E3[n, (i,k), (c,m)] -- per-block matmul-2 weight; kept f32 (tiny).
    E3 = jnp.transpose(E, (4, 0, 2, 1, 3)).reshape(blocks, IK, CM).astype(jnp.float32)

    # conv_b[i] is added once per (j, m) term in the PyTorch loops -> 4*ch_in*b_i.
    bias_ik = jnp.repeat((4.0 * ch_in) * conv_b.astype(jnp.float32), 4).reshape(IK, 1)

    # ---- lane-dense padding and VMEM-budget-driven tile selection ----
    Pp = _round_up(P, 128)
    NPp = _round_up(NP, 128)

    def vmem_bytes(tnp_, tp_, Bc_):
        return (2 * Bc_ * CM * tnp_ * 2      # img tile, double-buffered, bf16
                + 2 * tnp_ * tp_ * 2         # weights tile, double-buffered, bf16
                + 2 * IK * CM * 4            # E3 slab
                + 2 * IK * 128 * 4           # bias
                + Bc_ * CM * tp_ * 4         # r accumulator (f32)
                + 2 * Bc_ * IK * tp_ * 4)    # output block, double-buffered (f32)

    # Prefer the whole NP reduction in one tile; then the largest P tile that fits.
    tnp, tp = 128, 128
    done = False
    for tnp_c in _divisor_tiles(NPp, max_tnp):
        for tp_c in _divisor_tiles(Pp, max_tp):
            if vmem_bytes(tnp_c, tp_c, B) <= vmem_budget_bytes:
                tnp, tp = tnp_c, tp_c
                done = True
                break
        if done:
            break

    # Keep >= 2 iterations along a parallel grid axis when possible (v7x: 2 TCs).
    p_tiles = Pp // tp
    bc = 2 if (p_tiles < 2 and B >= 2 and B % 2 == 0) else 1
    Bc = B // bc

    # ---- operand layout ----
    # img folded: batch into matmul-1 rows -> (bc, Bc*CM, NPp), bf16.
    img2 = img.reshape(B, CM, NP)
    if NPp != NP:
        img2 = jnp.pad(img2, ((0, 0), (0, 0), (0, NPp - NP)))
    img2 = img2.reshape(bc, Bc * CM, NPp).astype(compute_dtype)

    # weights padded (P, NP) and pre-transposed to (blocks, NPp, Pp), bf16.
    w2 = weights
    if Pp != P or NPp != NP:
        w2 = jnp.pad(w2, ((0, 0), (0, Pp - P), (0, NPp - NP)))
    w2t = jnp.transpose(w2, (0, 2, 1)).astype(compute_dtype)

    grid = (bc, p_tiles, blocks, NPp // tnp)

    flops = 2 * blocks * (B * CM * NPp * Pp + B * IK * CM * Pp)
    bytes_accessed = (
        p_tiles * blocks * B * CM * NPp * 2        # img re-stream (worst case)
        + bc * blocks * NPp * Pp * 2               # weights stream (per batch chunk)
        + bc * p_tiles * blocks * IK * CM * 4      # E3
        + B * IK * Pp * 4)                         # output

    kernel = _make_fused_kernel(Bc, CM)

    out = pl.pallas_call(
        kernel,
        out_shape=jax.ShapeDtypeStruct((bc, Bc, IK, Pp), jnp.float32),
        grid_spec=pltpu.PrefetchScalarGridSpec(
            num_scalar_prefetch=0,
            grid=grid,
            in_specs=[
                # img2: (bc, Bc*CM, NPp) -> (Bc*CM, tnp) tile for chunk c
                pl.BlockSpec((None, Bc * CM, tnp), lambda c, pt, n, kt: (c, 0, kt)),
                # weights: (blocks, NPp, Pp) -> (tnp, tp) tile for block n (canonical K,N)
                pl.BlockSpec((None, tnp, tp), lambda c, pt, n, kt: (n, kt, pt)),
                # E3: (blocks, IK, CM) -> (IK, CM) slab for block n (tiny)
                pl.BlockSpec((None, IK, CM), lambda c, pt, n, kt: (n, 0, 0)),
                # bias: (IK, 1), resident
                pl.BlockSpec((IK, 1), lambda c, pt, n, kt: (0, 0)),
            ],
            out_specs=pl.BlockSpec((None, Bc, IK, tp),
                                   lambda c, pt, n, kt: (c, 0, 0, pt)),
            scratch_shapes=[pltpu.VMEM((Bc * CM, tp), jnp.float32)],  # r accumulator
        ),
        compiler_params=pltpu.CompilerParams(
            # chunk / p-tile are independent (megacore-splittable); the two
            # reduction axes carry the VMEM r-accumulator and the output block.
            dimension_semantics=("parallel", "parallel", "arbitrary", "arbitrary"),
            # Explicit scoped-VMEM limit: tiles are budgeted to <= 20 MiB, so
            # 32 MiB is safe on v5e/v6e (128 MiB) and v7x (64 MiB physical).
            vmem_limit_bytes=32 * 1024 * 1024),
        cost_estimate=pl.CostEstimate(flops=flops, transcendentals=0,
                                      bytes_accessed=bytes_accessed),
    )(img2, w2t, E3, bias_ik)

    out = out.reshape(B, IK, Pp)[:, :, :P]          # drop padded P columns
    return out.reshape(B, ch_out, 4, cd, cd)


# ------------------------------------------------------------------
# Pure-JAX reference that mirrors the PyTorch loops (for verification)
# ------------------------------------------------------------------
def reference_forward(img, params):
    conv_w = params['conv_w']
    conv_b = params['conv_b']
    mtx1 = params['mtx1']
    mtx2 = params['mtx2']
    weights = params['weights']
    cpt = params['cparams_transform']

    B, ch_in, G, H, W = img.shape
    ch_out = conv_w.shape[0]
    ks = conv_w.shape[-1]
    ks2 = ks * ks
    blocks, P, NP = weights.shape
    cd = int(round(math.sqrt(P)))

    img_f = img.reshape(B, ch_in, G, NP)
    result = jnp.stack([img_f @ weights[i].T for i in range(blocks)])   # (blocks,B,ch_in,4,P)
    per_result = jnp.transpose(result, (2, 3, 1, 4, 0))                 # (ch_in,4,B,P,blocks)

    out = []
    for i in range(ch_out):
        out_temp = None
        for j in range(ch_in):
            conv_ij = conv_w[i, j].reshape(4, ks2)
            cp_list = [jnp.sum(jnp.einsum('bij,bj->bi', cpt[ii], conv_ij), axis=0)
                       for ii in range(16)]
            cp = jnp.stack(cp_list).reshape(4, 4, ks2)
            k_out = []
            for k in range(4):
                m_sum = 0.0
                for m in range(4):
                    mtx1_temp = (cp[k, m].reshape(ks2, 1) * mtx1).reshape(-1)
                    mtx2_temp = mtx1_temp @ mtx2
                    result_temp = jnp.sum(mtx2_temp * per_result[j, m], axis=2) + conv_b[i]
                    m_sum = m_sum + result_temp
                k_out.append(m_sum)
            mlp_out = jnp.transpose(jnp.stack(k_out), (1, 0, 2))        # (B,4,P)
            out_temp = mlp_out if out_temp is None else out_temp + mlp_out
        out.append(out_temp)
    out = jnp.stack(out)                                                # (ch_out,B,4,P)
    return jnp.transpose(out, (1, 0, 2, 3)).reshape(-1, ch_out, 4, cd, cd)


# ------------------------------------------------------------------
if __name__ == "__main__":
    # Small shapes consistent with the module.
    B, ch_in, ch_out, img_dim, ks = 2, 2, 3, 8, 3
    blocks, M1 = 4, 5
    cd = cnn_dim_out(img_dim, ks, 1, 0)       # 6
    P, NP, ks2 = cd * cd, img_dim * img_dim, ks * ks

    key = jax.random.PRNGKey(0)
    keys = jax.random.split(key, 7)
    params = {
        'conv_w': jax.random.uniform(keys[0], (ch_out, ch_in, 4, ks, ks),
                                     jnp.float32, -0.3, 0.3),
        'conv_b': jax.random.uniform(keys[1], (ch_out,), jnp.float32, -0.1, 0.1),
        'mtx1': jax.random.uniform(keys[2], (ks2, M1), jnp.float32, -0.5, 0.5),
        'mtx2': jax.random.uniform(keys[3], (ks2 * M1, blocks), jnp.float32, -0.5, 0.5),
        'weights': jax.random.normal(keys[4], (blocks, P, NP), jnp.float32) / np.sqrt(NP),
        'cparams_transform': jax.random.uniform(keys[5], (16, 4, ks2, ks2),
                                                jnp.float32, -0.5, 0.5),
    }
    img = jax.random.normal(keys[6], (B, ch_in, 4, img_dim, img_dim), jnp.float32)

    fwd = jax.jit(mlp_gconv_p4_forward)
    out = jax.block_until_ready(fwd(img, params))
    assert out.shape == (B, ch_out, 4, cd, cd), out.shape

    with jax.default_matmul_precision('float32'):
        ref = jax.block_until_ready(reference_forward(img, params))
    # bf16 MXU operands + f32 accumulation: error is ~1e-3, comfortably within 2e-2.
    np.testing.assert_allclose(np.asarray(out), np.asarray(ref), rtol=2e-2, atol=2e-2)

    print("KERNEL_OK")
</pallas_src>

<mosaic_0001>
module attributes {stable_mosaic.version = 11 : i64} {
  func.func @kernel(%arg0: i32, %arg1: i32, %arg2: i32, %arg3: i32, %arg4: memref<1x8x128xbf16, #tpu.memory_space<vmem>>, %arg5: memref<1x128x128xbf16, #tpu.memory_space<vmem>>, %arg6: memref<1x12x8xf32, #tpu.memory_space<vmem>>, %arg7: memref<12x1xf32, #tpu.memory_space<vmem>>, %arg8: memref<1x1x12x128xf32, #tpu.memory_space<vmem>>, %arg9: memref<8x128xf32, #tpu.memory_space<vmem>>) attributes {dimension_semantics = [#tpu.dimension_semantics<parallel>, #tpu.dimension_semantics<parallel>, #tpu.dimension_semantics<arbitrary>, #tpu.dimension_semantics<arbitrary>], iteration_bounds = array<i64: 2, 1, 4, 1>, scalar_prefetch = 0 : i64, scratch_operands = 1 : i64, tpu.core_type = #tpu.core_type<tc>, window_params = [{transform_indices = @transform_0, window_bounds = array<i64: 1, 8, 128>}, {transform_indices = @transform_1, window_bounds = array<i64: 1, 128, 128>}, {transform_indices = @transform_2, window_bounds = array<i64: 1, 12, 8>}, {pipeline_mode = #tpu.pipeline_mode<synchronous>, transform_indices = @transform_3, window_bounds = array<i64: 12, 1>}, {transform_indices = @transform_4, window_bounds = array<i64: 1, 1, 12, 128>}]} {
    %c0_i32 = arith.constant 0 : i32
    %0 = arith.cmpi eq, %arg2, %c0_i32 : i32
    %c0_i32_0 = arith.constant 0 : i32
    %1 = arith.cmpi eq, %arg3, %c0_i32_0 : i32
    %2 = arith.andi %0, %1 : i1
    %3 = arith.extui %2 : i1 to i32
    %c0_i32_1 = arith.constant 0 : i32
    %4 = arith.cmpi ne, %3, %c0_i32_1 : i32
    scf.if %4 {
      %c0_15 = arith.constant 0 : index
      %c0_16 = arith.constant 0 : index
      %19 = vector.load %arg7[%c0_15, %c0_16] : memref<12x1xf32, #tpu.memory_space<vmem>>, vector<12x1xf32>
      %20 = vector.shape_cast %19 : vector<12x1xf32> to vector<1x12x1xf32>
      %21 = vector.broadcast %20 : vector<1x12x1xf32> to vector<1x12x128xf32>
      %c0_17 = arith.constant 0 : index
      %c0_18 = arith.constant 0 : index
      %c0_19 = arith.constant 0 : index
      %c0_20 = arith.constant 0 : index
      %22 = vector.load %arg8[%c0_17, %c0_18, %c0_19, %c0_20] : memref<1x1x12x128xf32, #tpu.memory_space<vmem>>, vector<1x1x12x128xf32>
      %23 = vector.shape_cast %22 : vector<1x1x12x128xf32> to vector<1x12x128xf32>
      %24 = vector.shape_cast %21 : vector<1x12x128xf32> to vector<1x1x12x128xf32>
      tpu.vector_store %arg8[%c0_17, %c0_18, %c0_19, %c0_20], %24 {strides = array<i32>} : memref<1x1x12x128xf32, #tpu.memory_space<vmem>>, vector<1x1x12x128xf32>,
    } else {
    }
    %c0_i32_2 = arith.constant 0 : i32
    %5 = arith.cmpi eq, %arg3, %c0_i32_2 : i32
    %6 = arith.extui %5 : i1 to i32
    %c0_i32_3 = arith.constant 0 : i32
    %7 = arith.cmpi ne, %6, %c0_i32_3 : i32
    scf.if %7 {
      %cst_15 = arith.constant 0.000000e+00 : f32
      %19 = vector.broadcast %cst_15 : f32 to vector<8x128xf32>
      %c0_16 = arith.constant 0 : index
      %c0_17 = arith.constant 0 : index
      %20 = vector.load %arg9[%c0_16, %c0_17] : memref<8x128xf32, #tpu.memory_space<vmem>>, vector<8x128xf32>
      tpu.vector_store %arg9[%c0_16, %c0_17], %19 {strides = array<i32>} : memref<8x128xf32, #tpu.memory_space<vmem>>, vector<8x128xf32>,
    } else {
    }
    %c0 = arith.constant 0 : index
    %c0_4 = arith.constant 0 : index
    %8 = vector.load %arg9[%c0, %c0_4] : memref<8x128xf32, #tpu.memory_space<vmem>>, vector<8x128xf32>
    %c0_5 = arith.constant 0 : index
    %c0_6 = arith.constant 0 : index
    %c0_7 = arith.constant 0 : index
    %9 = vector.load %arg4[%c0_5, %c0_6, %c0_7] : memref<1x8x128xbf16, #tpu.memory_space<vmem>>, vector<1x8x128xbf16>
    %10 = vector.shape_cast %9 : vector<1x8x128xbf16> to vector<8x128xbf16>
    %c0_8 = arith.constant 0 : index
    %c0_9 = arith.constant 0 : index
    %c0_10 = arith.constant 0 : index
    %11 = vector.load %arg5[%c0_8, %c0_9, %c0_10] : memref<1x128x128xbf16, #tpu.memory_space<vmem>>, vector<1x128x128xbf16>
    %12 = vector.shape_cast %11 : vector<1x128x128xbf16> to vector<128x128xbf16>
    %cst = arith.constant dense<0.000000e+00> : vector<8x128xf32>
    %13 = tpu.matmul %10, %12, %cst {dimension_numbers = #tpu.dot_dimension_numbers<[1], [0], [0], [1], [0, 0, 1, 1], [], []>} : vector<8x128xbf16>, vector<128x128xbf16>, vector<8x128xf32> -> vector<8x128xf32>
    %14 = arith.addf %8, %13 : vector<8x128xf32>
    %c0_11 = arith.constant 0 : index
    %c0_12 = arith.constant 0 : index
    %15 = vector.load %arg9[%c0_11, %c0_12] : memref<8x128xf32, #tpu.memory_space<vmem>>, vector<8x128xf32>
    tpu.vector_store %arg9[%c0_11, %c0_12], %14 {strides = array<i32>} : memref<8x128xf32, #tpu.memory_space<vmem>>, vector<8x128xf32>,
    %c0_i32_13 = arith.constant 0 : i32
    %16 = arith.cmpi eq, %arg3, %c0_i32_13 : i32
    %17 = arith.extui %16 : i1 to i32
    %c0_i32_14 = arith.constant 0 : i32
    %18 = arith.cmpi ne, %17, %c0_i32_14 : i32
    scf.if %18 {
      %c0_15 = arith.constant 0 : index
      %c0_16 = arith.constant 0 : index
      %c0_17 = arith.constant 0 : index
      %19 = vector.load %arg6[%c0_15, %c0_16, %c0_17] : memref<1x12x8xf32, #tpu.memory_space<vmem>>, vector<1x12x8xf32>
      %20 = vector.shape_cast %19 : vector<1x12x8xf32> to vector<12x8xf32>
      %c0_18 = arith.constant 0 : index
      %c0_19 = arith.constant 0 : index
      %c0_20 = arith.constant 0 : index
      %c0_21 = arith.constant 0 : index
      %21 = vector.load %arg8[%c0_18, %c0_19, %c0_20, %c0_21] : memref<1x1x12x128xf32, #tpu.memory_space<vmem>>, vector<1x1x12x128xf32>
      %22 = vector.shape_cast %21 : vector<1x1x12x128xf32> to vector<12x128xf32>
      %c0_22 = arith.constant 0 : index
      %c0_23 = arith.constant 0 : index
      %23 = vector.load %arg9[%c0_22, %c0_23] : memref<8x128xf32, #tpu.memory_space<vmem>>, vector<8x128xf32>
      %cst_24 = arith.constant dense<0.000000e+00> : vector<12x128xf32>
      %24 = tpu.matmul %20, %23, %cst_24 {dimension_numbers = #tpu.dot_dimension_numbers<[1], [0], [0], [1], [0, 0, 1, 1], [], []>} : vector<12x8xf32>, vector<8x128xf32>, vector<12x128xf32> -> vector<12x128xf32>
      %25 = arith.addf %22, %24 : vector<12x128xf32>
      %c0_25 = arith.constant 0 : index
      %c0_26 = arith.constant 0 : index
      %c0_27 = arith.constant 0 : index
      %c0_28 = arith.constant 0 : index
      %26 = vector.load %arg8[%c0_25, %c0_26, %c0_27, %c0_28] : memref<1x1x12x128xf32, #tpu.memory_space<vmem>>, vector<1x1x12x128xf32>
      %27 = vector.shape_cast %26 : vector<1x1x12x128xf32> to vector<12x128xf32>
      %28 = vector.shape_cast %25 : vector<12x128xf32> to vector<1x1x12x128xf32>
      tpu.vector_store %arg8[%c0_25, %c0_26, %c0_27, %c0_28], %28 {strides = array<i32>} : memref<1x1x12x128xf32, #tpu.memory_space<vmem>>, vector<1x1x12x128xf32>,
    } else {
    }
    return
  }
  func.func @transform_0(%arg0: i32, %arg1: i32, %arg2: i32, %arg3: i32) -> (i32, i32, i32) {
    %c0_i32 = arith.constant 0 : i32
    %c0_i32_0 = arith.constant 0 : i32
    return %arg0, %c0_i32, %arg3 : i32, i32, i32
  }
  func.func @transform_1(%arg0: i32, %arg1: i32, %arg2: i32, %arg3: i32) -> (i32, i32, i32) {
    %c0_i32 = arith.constant 0 : i32
    return %arg2, %arg3, %arg1 : i32, i32, i32
  }
  func.func @transform_2(%arg0: i32, %arg1: i32, %arg2: i32, %arg3: i32) -> (i32, i32, i32) {
    %c0_i32 = arith.constant 0 : i32
    %c0_i32_0 = arith.constant 0 : i32
    %c0_i32_1 = arith.constant 0 : i32
    return %arg2, %c0_i32, %c0_i32_0 : i32, i32, i32
  }
  func.func @transform_3(%arg0: i32, %arg1: i32, %arg2: i32, %arg3: i32) -> (i32, i32) {
    %c0_i32 = arith.constant 0 : i32
    %c0_i32_0 = arith.constant 0 : i32
    %c0_i32_1 = arith.constant 0 : i32
    return %c0_i32, %c0_i32_0 : i32, i32
  }
  func.func @transform_4(%arg0: i32, %arg1: i32, %arg2: i32, %arg3: i32) -> (i32, i32, i32, i32) {
    %c0_i32 = arith.constant 0 : i32
    %c0_i32_0 = arith.constant 0 : i32
    %c0_i32_1 = arith.constant 0 : i32
    return %arg0, %c0_i32, %c0_i32_0, %arg1 : i32, i32, i32, i32
  }
}

</mosaic_0001>

<llo_original>
// kernel: mlp_gconv_p4_forward.1
$region0: #{mlp_gconv_p4_forward.1}
  #allocation0 [shape = 'u32[]', space=smem, size = 0x4, offset = 0x4, fixed_abs, tag = 'smem constant byte address 0x4 - core index']
  #allocation1 [shape = 'u32[72,128]{1,0:T(1,128)}', space=vmem, size = 0x9000, scoped, tag = 'internal scratch']
  #allocation2 [shape = 'f32[8,128]{1,0:T(8,128)}', space=vmem, size = 0x1000, scoped, tag = 'scratch operand']
  %s0 = inlined_call_operand.vmem [shape: bf16[2,8,128], index: 0, kind: input, shape index: {}]
  %s1 = inlined_call_operand.vmem [shape: bf16[4,128,128], index: 1, kind: input, shape index: {}]
  %s2 = inlined_call_operand.vmem [shape: f32[4,12,8], index: 2, kind: input, shape index: {}]
  %s3 = inlined_call_operand.vmem [shape: f32[12,1], index: 3, kind: input, shape index: {}]
  %s4 = inlined_call_operand.vmem [shape: f32[2,1,12,128], index: 4, kind: output, shape index: {}]
  %s5 = sld [smem:[#allocation0]]
  $region61: #{mlp_gconv_p4_forward.1} parent=0
    _
  %s7 = ssub.s32 1, %s5
  %s8 = scalar_select 0, %s7, %s5
  loop: start=0, step=1, limit=10
  $region2: #{mlp_gconv_p4_forward.1} parent=0 // loop_pre_header
    _
  $region3: #{mlp_gconv_p4_forward.1} parent=0 // loop_header
    %s10 = sphi 0, %s14
    %p11 = scmp.ge.s32.totalorder %s10, 10
    %s17 = sphi 0, %s43
    %s18 = sphi 0, %s39
    %s19 = sphi 0, %s35
    %s20 = sphi 0, %s31
    %s21 = sphi 0, %s17
    %s22 = sphi 0, %s18
    %s23 = sphi 0, %s19
    %s24 = sphi 0, %s20
    %s25 = sphi 0, %s21
    %s26 = sphi 0, %s22
    %s27 = sphi 0, %s23
    %s28 = sphi 0, %s24
    %s48 = sphi 0, %s50
    %s51 = sphi 0, %s48
    %s52 = sphi 0, %s51
    %s68 = sphi 0, %s52
    %s78 = sphi 0, %s80
    %s81 = sphi 0, %s78
    %s82 = sphi 0, %s81
    %s98 = sphi 0, %s82
    %s104 = sphi 0, %s106
    %s107 = sphi 0, %s104
    %s108 = sphi 0, %s107
    %s124 = sphi 0, %s108
    %s128 = sphi 0, %s128
    %s130 = sphi 0, %s128
    %s131 = sphi 0, %s130
    %s145 = sphi 0, %s131
    %s153 = sphi 0, %s155
    %s156 = sphi 0, %s153
    %s157 = sphi 0, %s156
    %s173 = sphi 0, %s157
  $region4: #{mlp_gconv_p4_forward.1} parent=0 // loop_header_branch
    %13 = sbr.rel (%p11) target = $region8
  $region5: #{mlp_gconv_p4_forward.1} parent=0 // loop_body
    %s15 = ssub.s32 %s10, 1
    %s16 = ssub.s32 %s10, 2
    %s29 = sadd.s32 1, %s20
    %p30 = scmp.ge.s32.totalorder %s29, 1
    %s31 = scalar_select %p30, 0, %s29
    %s32 = sadd.s32 1, %s19
    %s33 = scalar_select %p30, %s32, %s19
    %p34 = scmp.ge.s32.totalorder %s33, 4
    %s35 = scalar_select %p34, 0, %s33
    %s36 = sadd.s32 1, %s18
    %s37 = scalar_select %p34, %s36, %s18
    %p38 = scmp.ge.s32.totalorder %s37, 1
    %s39 = scalar_select %p38, 0, %s37
    %s40 = sadd.s32 1, %s17
    %s41 = scalar_select %p38, %s40, %s17
    %p42 = scmp.ge.s32.totalorder %s41, 2
    %s43 = scalar_select %p42, 0, %s41
    %s44 = ssub.s32 %s17, %s43
    %s45 = ssub.s32 %s20, %s31
    %s46 = sor.u32 %s44, %s45
    %p47 = scmp.eq.s32.totalorder %s46, 0
    %s49 = sadd.s32 %s48, 1
    %s50 = scalar_select %p47, %s48, %s49
    %p53 = pneg %p47
    %p54 = scmp.eq.s32.totalorder %s10, 7
    %p55 = por %p53, %p54
    %p56 = scmp.ne.s32.totalorder %s48, %s51
    %p57 = scmp.eq.s32.totalorder %s10, 0
    %p58 = por %p56, %p57
    %p59 = scmp.ne.s32.totalorder %s48, %s51
    %p60 = scmp.eq.s32.totalorder %s15, 7
    %p61 = por %p59, %p60
    %p62 = scmp.ne.s32.totalorder %s51, %s52
    %p63 = scmp.eq.s32.totalorder %s15, 0
    %p64 = por %p62, %p63
    %p65 = scmp.ne.s32.totalorder %s51, %s52
    %p66 = scmp.eq.s32.totalorder %s16, 7
    %p67 = por %p65, %p66
    %p69 = scmp.ne.s32.totalorder %s52, %s68
    %p70 = scmp.eq.s32.totalorder %s16, 0
    %p71 = por %p69, %p70
    %s72 = ssub.s32 %s19, %s35
    %s73 = ssub.s32 %s20, %s31
    %s74 = sor.u32 %s72, %s73
    %s75 = ssub.s32 %s18, %s39
    %s76 = sor.u32 %s74, %s75
    %p77 = scmp.eq.s32.totalorder %s76, 0
    %s79 = sadd.s32 %s78, 1
    %s80 = scalar_select %p77, %s78, %s79
    %p83 = pneg %p77
    %p84 = scmp.eq.s32.totalorder %s10, 7
    %p85 = por %p83, %p84
    %p86 = scmp.ne.s32.totalorder %s78, %s81
    %p87 = scmp.eq.s32.totalorder %s10, 0
    %p88 = por %p86, %p87
    %p89 = scmp.ne.s32.totalorder %s78, %s81
    %p90 = scmp.eq.s32.totalorder %s15, 7
    %p91 = por %p89, %p90
    %p92 = scmp.ne.s32.totalorder %s81, %s82
    %p93 = scmp.eq.s32.totalorder %s15, 0
    %p94 = por %p92, %p93
    %p95 = scmp.ne.s32.totalorder %s81, %s82
    %p96 = scmp.eq.s32.totalorder %s16, 7
    %p97 = por %p95, %p96
    %p99 = scmp.ne.s32.totalorder %s82, %s98
    %p100 = scmp.eq.s32.totalorder %s16, 0
    %p101 = por %p99, %p100
    %s102 = ssub.s32 %s19, %s35
    %p103 = scmp.eq.s32.totalorder %s102, 0
    %s105 = sadd.s32 %s104, 1
    %s106 = scalar_select %p103, %s104, %s105
    %p109 = pneg %p103
    %p110 = scmp.eq.s32.totalorder %s10, 7
    %p111 = por %p109, %p110
    %p112 = scmp.ne.s32.totalorder %s104, %s107
    %p113 = scmp.eq.s32.totalorder %s10, 0
    %p114 = por %p112, %p113
    %p115 = scmp.ne.s32.totalorder %s104, %s107
    %p116 = scmp.eq.s32.totalorder %s15, 7
    %p117 = por %p115, %p116
    %p118 = scmp.ne.s32.totalorder %s107, %s108
    %p119 = scmp.eq.s32.totalorder %s15, 0
    %p120 = por %p118, %p119
    %p121 = scmp.ne.s32.totalorder %s107, %s108
    %p122 = scmp.eq.s32.totalorder %s16, 7
    %p123 = por %p121, %p122
    %p125 = scmp.ne.s32.totalorder %s108, %s124
    %p126 = scmp.eq.s32.totalorder %s16, 0
    %p127 = por %p125, %p126
    %s129 = sadd.s32 %s128, 1
    %p132 = scmp.eq.s32.totalorder %s10, 7
    %p133 = scmp.ne.s32.totalorder %s128, %s130
    %p134 = scmp.eq.s32.totalorder %s10, 0
    %p135 = por %p133, %p134
    %p136 = scmp.ne.s32.totalorder %s128, %s130
    %p137 = scmp.eq.s32.totalorder %s15, 7
    %p138 = por %p136, %p137
    %p139 = scmp.ne.s32.totalorder %s130, %s131
    %p140 = scmp.eq.s32.totalorder %s15, 0
    %p141 = por %p139, %p140
    %p142 = scmp.ne.s32.totalorder %s130, %s131
    %p143 = scmp.eq.s32.totalorder %s16, 7
    %p144 = por %p142, %p143
    %p146 = scmp.ne.s32.totalorder %s131, %s145
    %p147 = scmp.eq.s32.totalorder %s16, 0
    %p148 = por %p146, %p147
    %s149 = ssub.s32 %s17, %s43
    %s150 = ssub.s32 %s18, %s39
    %s151 = sor.u32 %s149, %s150
    %p152 = scmp.eq.s32.totalorder %s151, 0
    %s154 = sadd.s32 %s153, 1
    %s155 = scalar_select %p152, %s153, %s154
    %p158 = pneg %p152
    %p159 = scmp.eq.s32.totalorder %s10, 7
    %p160 = por %p158, %p159
    %p161 = scmp.ne.s32.totalorder %s153, %s156
    %p162 = scmp.eq.s32.totalorder %s10, 0
    %p163 = por %p161, %p162
    %p164 = scmp.ne.s32.totalorder %s153, %s156
    %p165 = scmp.eq.s32.totalorder %s15, 7
    %p166 = por %p164, %p165
    %p167 = scmp.ne.s32.totalorder %s156, %s157
    %p168 = scmp.eq.s32.totalorder %s15, 0
    %p169 = por %p167, %p168
    %p170 = scmp.ne.s32.totalorder %s156, %s157
    %p171 = scmp.eq.s32.totalorder %s16, 7
    %p172 = por %p170, %p171
    %p174 = scmp.ne.s32.totalorder %s157, %s173
    %p175 = scmp.eq.s32.totalorder %s16, 0
    %p176 = por %p174, %p175
    %p177 = scmp.le.s32.totalorder 1, %s10
    %p178 = scmp.lt.s32.totalorder %s10, 9
    %p179 = pnand %p177, %p178
    %p180 = pneg %p179
    // Predicated region
    $region9: #{mlp_gconv_p4_forward.1} parent=5 // pred_check
      _
    $region10: #{mlp_gconv_p4_forward.1} parent=5 // pred_check_branch
      %182 = sbr.rel (%p179) target = $region12
    $region11: #{mlp_gconv_p4_forward.1} parent=5 // pred_region
      %s183 = ssub.s32 %s10, 1
      // Predicated region
      $region13: #{mlp_gconv_p4_forward.1} parent=11 // pred_check
        %p184 = pneg %p141
      $region14: #{mlp_gconv_p4_forward.1} parent=11 // pred_check_branch
        %186 = sbr.rel (%p184) target = $region16
      $region15: #{mlp_gconv_p4_forward.1} parent=11 // pred_region
        _
      $region16: #{mlp_gconv_p4_forward.1} parent=11 // pred_fallthru
        _
    $region12: #{mlp_gconv_p4_forward.1} parent=5 // pred_fallthru
      _
    %p187 = scmp.lt.s32.totalorder %s10, 8
    // Predicated region
    $region17: #{mlp_gconv_p4_forward.1} parent=5 // pred_check
      %p188 = pneg %p187
    $region18: #{mlp_gconv_p4_forward.1} parent=5 // pred_check_branch
      %190 = sbr.rel (%p188) target = $region20
    $region19: #{mlp_gconv_p4_forward.1} parent=5 // pred_region
      // Predicated region
      $region21: #{mlp_gconv_p4_forward.1} parent=19 // pred_check
        %p191 = pneg %p58
      $region22: #{mlp_gconv_p4_forward.1} parent=19 // pred_check_branch
        %193 = sbr.rel (%p191) target = $region24
      $region23: #{mlp_gconv_p4_forward.1} parent=19 // pred_region
        %p194 = scmp.lt.s32.totalorder %s17, 1
        %s195 = scalar_select %p194, %s17, 1
        %p196 = scmp.lt.s32.totalorder %s20, 0
        %s197 = scalar_select %p196, %s20, 0
        %s198 = sadd.s32 %s197, %s195
        %s199 = smul.addr %s198, 4
        %s200 = scalar_lea.vmem %s0, %s199
      $region24: #{mlp_gconv_p4_forward.1} parent=19 // pred_fallthru
        _
      // Predicated region
      $region25: #{mlp_gconv_p4_forward.1} parent=19 // pred_check
        %p201 = pneg %p88
      $region26: #{mlp_gconv_p4_forward.1} parent=19 // pred_check_branch
        %203 = sbr.rel (%p201) target = $region28
      $region27: #{mlp_gconv_p4_forward.1} parent=19 // pred_region
        %s204 = smul.u32 16, %s20
        %p205 = scmp.lt.s32.totalorder %s19, 3
        %s206 = scalar_select %p205, %s19, 3
        %p207 = scmp.lt.s32.totalorder %s204, 15
        %s208 = scalar_select %p207, %s204, 15
        %p209 = scmp.lt.s32.totalorder %s18, 0
        %s210 = scalar_select %p209, %s18, 0
        %s211 = sadd.s32 %s210, %s208
        %s212 = smul.addr %s206, 16
        %s213 = sadd.s32 %s211, %s212
        %s214 = smul.addr %s213, 4
        %s215 = scalar_lea.vmem %s1, %s214
        %s216 = smul.u32 16, %s20
      $region28: #{mlp_gconv_p4_forward.1} parent=19 // pred_fallthru
        _
      // Predicated region
      $region29: #{mlp_gconv_p4_forward.1} parent=19 // pred_check
        %p217 = pneg %p114
      $region30: #{mlp_gconv_p4_forward.1} parent=19 // pred_check_branch
        %219 = sbr.rel (%p217) target = $region32
      $region31: #{mlp_gconv_p4_forward.1} parent=19 // pred_region
        %p220 = scmp.lt.s32.totalorder %s19, 3
        %s221 = scalar_select %p220, %s19, 3
        %s222 = smul.addr %s221, 2
        %s223 = smul.addr %s222, 8
        %s224 = scalar_lea.vmem %s2, %s223
      $region32: #{mlp_gconv_p4_forward.1} parent=19 // pred_fallthru
        _
    $region20: #{mlp_gconv_p4_forward.1} parent=5 // pred_fallthru
      _
    %p225 = scmp.le.s32.totalorder 1, %s10
    %p226 = scmp.lt.s32.totalorder %s10, 9
    %p227 = pnand %p225, %p226
    %p228 = pneg %p227
    // Predicated region
    $region33: #{mlp_gconv_p4_forward.1} parent=5 // pred_check
      _
    $region34: #{mlp_gconv_p4_forward.1} parent=5 // pred_check_branch
      %230 = sbr.rel (%p227) target = $region36
    $region35: #{mlp_gconv_p4_forward.1} parent=5 // pred_region
      %s231 = ssub.s32 %s10, 1
      %p232 = scmp.lt.s32.totalorder %s21, 1
      %s233 = scalar_select %p232, %s21, 1
      %p234 = scmp.lt.s32.totalorder %s24, 0
      %s235 = scalar_select %p234, %s24, 0
      %s236 = sadd.s32 %s235, %s233
      %s237 = smul.addr %s236, 4
      %s238 = scalar_lea.vmem %s0, %s237
      %p239 = pneg %p64
      %p240 = pneg %p61
      %s241 = smul.u32 16, %s24
      %p242 = scmp.lt.s32.totalorder %s23, 3
      %s243 = scalar_select %p242, %s23, 3
      %p244 = scmp.lt.s32.totalorder %s241, 15
      %s245 = scalar_select %p244, %s241, 15
      %p246 = scmp.lt.s32.totalorder %s22, 0
      %s247 = scalar_select %p246, %s22, 0
      %s248 = sadd.s32 %s247, %s245
      %s249 = smul.addr %s243, 16
      %s250 = sadd.s32 %s248, %s249
      %s251 = smul.addr %s250, 4
      %s252 = scalar_lea.vmem %s1, %s251
      %p253 = pneg %p94
      %p254 = pneg %p91
      %p255 = scmp.lt.s32.totalorder %s23, 3
      %s256 = scalar_select %p255, %s23, 3
      %s257 = smul.addr %s256, 2
      %s258 = smul.addr %s257, 8
      %s259 = scalar_lea.vmem %s2, %s258
      %p260 = pneg %p120
      %p261 = pneg %p117
      %p262 = pneg %p141
      %p263 = pneg %p138
      %p264 = pneg %p169
      %p265 = pneg %p166
      %p266 = scmp.lt.s32.totalorder %s21, 1
      %s267 = scalar_select %p266, %s21, 1
      %p268 = scmp.lt.s32.totalorder %s22, 0
      %s269 = scalar_select %p268, %s22, 0
      %s270 = smul.addr %s267, 2
      %s271 = sadd.s32 %s269, %s270
      %s272 = smul.addr %s271, 8
      %s273 = scalar_lea.vmem %s4, %s272
      %p274 = scmp.lt.s32.totalorder %s21, 1
      %s275 = scalar_select %p274, %s21, 1
      %p276 = scmp.lt.s32.totalorder %s24, 0
      %s277 = scalar_select %p276, %s24, 0
      %s278 = sadd.s32 %s277, %s275
      %s279 = smul.addr %s278, 4
      %s280 = scalar_lea.vmem %s0, %s279
      %s281 = smul.u32 16, %s24
      %p282 = scmp.lt.s32.totalorder %s23, 3
      %s283 = scalar_select %p282, %s23, 3
      %p284 = scmp.lt.s32.totalorder %s281, 15
      %s285 = scalar_select %p284, %s281, 15
      %p286 = scmp.lt.s32.totalorder %s22, 0
      %s287 = scalar_select %p286, %s22, 0
      %s288 = sadd.s32 %s287, %s285
      %s289 = smul.addr %s283, 16
      %s290 = sadd.s32 %s288, %s289
      %s291 = smul.addr %s290, 4
      %s292 = scalar_lea.vmem %s1, %s291
      %s293 = smul.u32 16, %s24
      %p294 = scmp.lt.s32.totalorder %s23, 3
      %s295 = scalar_select %p294, %s23, 3
      %s296 = smul.addr %s295, 2
      %s297 = smul.addr %s296, 8
      %s298 = scalar_lea.vmem %s2, %s297
      %p299 = scmp.lt.s32.totalorder %s21, 1
      %s300 = scalar_select %p299, %s21, 1
      %p301 = scmp.lt.s32.totalorder %s22, 0
      %s302 = scalar_select %p301, %s22, 0
      %s303 = smul.addr %s300, 2
      %s304 = sadd.s32 %s302, %s303
      %s305 = smul.addr %s304, 8
      %s306 = scalar_lea.vmem %s4, %s305
      %p307 = scmp.eq.s32.totalorder %s23, 0
      %p308 = scmp.eq.s32.totalorder %s24, 0
      %p309 = pnand %p307, %p308
      %p310 = pneg %p309
      // Predicated region
      $region37: #{mlp_gconv_p4_forward.1} parent=35 // pred_check
        _
      $region38: #{mlp_gconv_p4_forward.1} parent=35 // pred_check_branch
        %312 = sbr.rel (%p309) target = $region40
      $region39: #{mlp_gconv_p4_forward.1} parent=35 // pred_region
        %v313 = vld [vmem:[%s3] sm:$0xff]
        %v314 = vld [vmem:[%s3 + $0x8] sm:$0xf]
        %316 = vset.pattern.permute.xlu0 0
        %317 = vperm.xlu0 %316, %v313
        %v318 = vpop.permute.xlu0 %317
        %321 = vset.pattern.permute.xlu0 0
        %322 = vperm.xlu0 %321, %v314
        %v323 = vpop.permute.xlu0 %322
        %325 = vst [vmem:[%s306] sm:$0xff] %v318
        %326 = vst [vmem:[%s306 + $0x8] sm:$0xf] %v323
      $region40: #{mlp_gconv_p4_forward.1} parent=35 // pred_fallthru
        _
      // Predicated region
      $region41: #{mlp_gconv_p4_forward.1} parent=35 // pred_check
        %p327 = pneg %p308
      $region42: #{mlp_gconv_p4_forward.1} parent=35 // pred_check_branch
        %329 = sbr.rel (%p327) target = $region44
      $region43: #{mlp_gconv_p4_forward.1} parent=35 // pred_region
        %330 = vst [vmem:[#allocation2] sm:$0xff] 0.0
      $region44: #{mlp_gconv_p4_forward.1} parent=35 // pred_fallthru
        _
      %v331 = vld [vmem:[#allocation2] sm:$0xff]
      %v332 = vld [vmem:[%s280] sm:$0xf]
      %v333 = vld [vmem:[%s292] sm:$0xf]
      %v334 = vld [vmem:[%s292 + $0x4] sm:$0xf]
      %v335 = vld [vmem:[%s292 + $0x8] sm:$0xf]
      %v336 = vld [vmem:[%s292 + $0xc] sm:$0xf]
      %v337 = vld [vmem:[%s292 + $0x10] sm:$0xf]
      %v338 = vld [vmem:[%s292 + $0x14] sm:$0xf]
      %v339 = vld [vmem:[%s292 + $0x18] sm:$0xf]
      %v340 = vld [vmem:[%s292 + $0x1c] sm:$0xf]
      %v341 = vld [vmem:[%s292 + $0x20] sm:$0xf]
      %v342 = vld [vmem:[%s292 + $0x24] sm:$0xf]
      %v343 = vld [vmem:[%s292 + $0x28] sm:$0xf]
      %v344 = vld [vmem:[%s292 + $0x2c] sm:$0xf]
      %v345 = vld [vmem:[%s292 + $0x30] sm:$0xf]
      %v346 = vld [vmem:[%s292 + $0x34] sm:$0xf]
      %v347 = vld [vmem:[%s292 + $0x38] sm:$0xf]
      %v348 = vld [vmem:[%s292 + $0x3c] sm:$0xf]
      %v365 = vunpack.c.l.b16 %v333
      %v366 = vunpack.c.l.b16 %v334
      %v367 = vunpack.c.l.b16 %v335
      %v368 = vunpack.c.l.b16 %v336
      %v369 = vunpack.c.l.b16 %v337
      %v370 = vunpack.c.l.b16 %v338
      %v371 = vunpack.c.l.b16 %v339
      %v372 = vunpack.c.l.b16 %v340
      %v373 = vunpack.c.l.b16 %v341
      %v374 = vunpack.c.l.b16 %v342
      %v375 = vunpack.c.l.b16 %v343
      %v376 = vunpack.c.l.b16 %v344
      %v377 = vunpack.c.l.b16 %v345
      %v378 = vunpack.c.l.b16 %v346
      %v379 = vunpack.c.l.b16 %v347
      %v380 = vunpack.c.l.b16 %v348
      %v381 = vpack.c.b16 %v366, %v365
      %v382 = vpack.c.b16 %v368, %v367
      %v383 = vpack.c.b16 %v370, %v369
      %v384 = vpack.c.b16 %v372, %v371
      %v385 = vpack.c.b16 %v374, %v373
      %v386 = vpack.c.b16 %v376, %v375
      %v387 = vpack.c.b16 %v378, %v377
      %v388 = vpack.c.b16 %v380, %v379
      %397 = vmatpush.bf16.msra.mxu0 %v388
      %398 = vmatpush.bf16.msra.mxu0 %v387
      %399 = vmatpush.bf16.msra.mxu0 %v386
      %400 = vmatpush.bf16.msra.mxu0 %v385
      %401 = vmatpush.bf16.msra.mxu0 %v384
      %402 = vmatpush.bf16.msra.mxu0 %v383
      %403 = vmatpush.bf16.msra.mxu0 %v382
      %404 = vmatpush.bf16.msra.mxu0 %v381
      %405 = vmatmul.bf16.gmra.mxu0 %v332
      %v406 = vpop.f32.mrf.mxu0
      %v407 = vadd.f32 0.0, %v406
      %v408 = vpop.f32.mrf.mxu0
      %409 = vdwg.mxu0
      %v410 = vadd.f32 %v331, %v407
      %411 = vst [vmem:[#allocation2] sm:$0xff] %v410
      // Predicated region
      $region45: #{mlp_gconv_p4_forward.1} parent=35 // pred_check
        %p412 = pneg %p308
      $region46: #{mlp_gconv_p4_forward.1} parent=35 // pred_check_branch
        %414 = sbr.rel (%p412) target = $region48
      $region47: #{mlp_gconv_p4_forward.1} parent=35 // pred_region
        %v415 = vld [vmem:[%s298] sm:$0xff]
        %v416 = vld [vmem:[%s298 + $0x8] sm:$0xf]
        %v417 = vld [vmem:[%s306] sm:$0xff]
        %v418 = vld [vmem:[%s306 + $0x8] sm:$0xf]
        %v419 = vld [vmem:[#allocation2] sm:$0xff]
        %vm420 = vcmask 64512
        %v422 = vsel %vm420, %v415, 0
        %v425 = vsel %vm420, %v416, 0
        %427 = vmatpush.msra.mxu0 0.0
        %428 = vmatpush.msra.mxu0 0.0
        %429 = vmatpush.msra.mxu0 0.0
        %430 = vmatpush.msra.mxu0 0.0
        %431 = vmatpush.msra.mxu0 0.0
        %432 = vmatpush.msra.mxu0 0.0
        %433 = vmatpush.msra.mxu0 0.0
        %434 = vmatpush.msra.mxu0 0.0
        %435 = vmatpush.msra.mxu0 0.0
        %436 = vmatpush.msra.mxu0 0.0
        %437 = vmatpush.msra.mxu0 0.0
        %438 = vmatpush.msra.mxu0 0.0
        %439 = vmatpush.msra.mxu0 0.0
        %440 = vmatpush.msra.mxu0 0.0
        %441 = vmatpush.msra.mxu0 0.0
        %442 = vmatpush.msra.mxu0 %v419
        %443 = vmatmul.f32.gmra.mxu0 %v422
        %v444 = vpop.f32.mrf.mxu0
        %v445 = vadd.f32 0.0, %v444
        %446 = vmatmul.f32.gmra.mxu0 %v425
        %v447 = vpop.f32.mrf.mxu0
        %v448 = vadd.f32 0.0, %v447
        %449 = vdwg.mxu0
        %v450 = vadd.f32 %v417, %v445
        %v451 = vadd.f32 %v418, %v448
        %452 = vst [vmem:[%s306] sm:$0xff] %v450
        %453 = vst [vmem:[%s306 + $0x8] sm:$0xf] %v451
      $region48: #{mlp_gconv_p4_forward.1} parent=35 // pred_fallthru
        _
      %p454 = scmp.lt.s32.totalorder %s21, 1
      %s455 = scalar_select %p454, %s21, 1
      %p456 = scmp.lt.s32.totalorder %s22, 0
      %s457 = scalar_select %p456, %s22, 0
      %s458 = smul.addr %s455, 2
      %s459 = sadd.s32 %s457, %s458
      %s460 = smul.addr %s459, 8
      %s461 = scalar_lea.vmem %s4, %s460
      // Predicated region
      $region49: #{mlp_gconv_p4_forward.1} parent=35 // pred_check
        %p462 = pneg %p166
      $region50: #{mlp_gconv_p4_forward.1} parent=35 // pred_check_branch
        %464 = sbr.rel (%p462) target = $region52
      $region51: #{mlp_gconv_p4_forward.1} parent=35 // pred_region
        _
      $region52: #{mlp_gconv_p4_forward.1} parent=35 // pred_fallthru
        _
    $region36: #{mlp_gconv_p4_forward.1} parent=5 // pred_fallthru
      _
    %p465 = scmp.le.s32.totalorder 2, %s10
    // Predicated region
    $region53: #{mlp_gconv_p4_forward.1} parent=5 // pred_check
      %p466 = pneg %p465
    $region54: #{mlp_gconv_p4_forward.1} parent=5 // pred_check_branch
      %468 = sbr.rel (%p466) target = $region56
    $region55: #{mlp_gconv_p4_forward.1} parent=5 // pred_region
      %s469 = ssub.s32 %s10, 2
      // Predicated region
      $region57: #{mlp_gconv_p4_forward.1} parent=55 // pred_check
        %p470 = pneg %p172
      $region58: #{mlp_gconv_p4_forward.1} parent=55 // pred_check_branch
        %472 = sbr.rel (%p470) target = $region60
      $region59: #{mlp_gconv_p4_forward.1} parent=55 // pred_region
        %p473 = scmp.lt.s32.totalorder %s25, 1
        %s474 = scalar_select %p473, %s25, 1
        %p475 = scmp.lt.s32.totalorder %s26, 0
        %s476 = scalar_select %p475, %s26, 0
        %s477 = smul.addr %s474, 2
        %s478 = sadd.s32 %s476, %s477
        %s479 = smul.addr %s478, 8
        %s480 = scalar_lea.vmem %s4, %s479
      $region60: #{mlp_gconv_p4_forward.1} parent=55 // pred_fallthru
        _
    $region56: #{mlp_gconv_p4_forward.1} parent=5 // pred_fallthru
      _
  $region6: #{mlp_gconv_p4_forward.1} parent=0 // loop_footer
    %s14 = sadd.s32 1, %s10
  $region7: #{mlp_gconv_p4_forward.1} parent=0 // loop_footer_branch
    %9 = sbr.rel target = $region3
  $region8: #{mlp_gconv_p4_forward.1} parent=0 // loop_exit
    _

</llo_original>
